<compile_context>
chip_gen: v7x
topology: tpu7x:2x2x1
jax: 0.10.0
libtpu: 0.0.40
codegen_flags: <defaults>
</compile_context>

<pallas_src>
import functools

import numpy as np

import jax
import jax.numpy as jnp
from jax.experimental import pallas as pl
from jax.experimental.pallas import tpu as pltpu


def _adaptive_avg_pool_matrix(lin, lout):
    """(lin, lout) matrix M with y = x @ M  ==  nn.AdaptiveAvgPool1d(lout)(x)."""
    m = np.zeros((lin, lout), dtype=np.float32)
    for i in range(lout):
        s = (i * lin) // lout
        e = -(-((i + 1) * lin) // lout)  # ceil
        m[s:e, i] = 1.0 / (e - s)
    return jnp.asarray(m)


def inception_kernel(xs_ref, slab_ref, bias_ref, out_ref, *,
                     w_cols, g_off, l_out, init_sparsity):
    # xs_ref   : (K*C, L_out)        im2col input (tap-major rows, time on lanes)
    # slab_ref : (NB, g_off + L_out) packed weights:
    #              [:, :w_cols]          flattened conv taps (NB, K*C)
    #              [:, g_off:g_off+L_out] per-branch gain = pool ∘ fc fold
    # bias_ref : (1, 1) SMEM         effective bias (fc bias + folded conv biases)
    # out_ref  : (1, 1) SMEM         init_sparsity * sigmoid(score)
    w = slab_ref[:, :w_cols]                         # (NB, K*C)   static view
    g = slab_ref[:, g_off:g_off + l_out]             # (NB, L_out) lane-aligned view

    # Fused 3-branch Conv1d: ONE MXU matmul (contraction K*C fills the MXU).
    conv = jnp.dot(w, xs_ref[...],
                   preferred_element_type=jnp.float32)        # (NB, L_out)

    # Pool + Linear folded into an elementwise gain: VPU mul + XLU reduce.
    score = jnp.sum(conv * g, keepdims=True) + bias_ref[0, 0]  # (1, 1)
    ratio = init_sparsity / (1.0 + jnp.exp(-score))            # (1, 1)
    out_ref[0, 0] = jnp.sum(ratio)


def market_guide_inception(x, conv_weights, conv_biases, fc_w, fc_b, *,
                           kernel_sizes, init_sparsity=0.2):
    """Pallas implementation of MarketGuideInception.forward.

    x: (L, C) market_index.  conv_weights[b]: (1, C, k_b), conv_biases[b]: (1,),
    fc_w: (1, len(kernel_sizes)*C), fc_b: (1,).  Returns (1, 1) float32.
    """
    L, C = x.shape
    nb = len(kernel_sizes)
    # Even kernel sizes give a common conv output length L+1 for every branch
    # (matches the module's default [4, 10, 20]).
    assert all(k % 2 == 0 for k in kernel_sizes)
    k_max = max(kernel_sizes)
    pad = k_max // 2
    l_out = L + 1
    f32 = jnp.float32

    # ---- activation-side layout: im2col slab, time on lanes (wrapper, XLA) ----
    xp = jnp.pad(jnp.transpose(x.astype(f32)), ((0, 0), (pad, pad)))   # (C, L+2*pad)
    xs = jnp.stack([xp[:, p:p + l_out] for p in range(k_max)], axis=0)  # (K, C, L_out)
    xs = xs.reshape(k_max * C, l_out)                                   # (K*C, L_out)

    # ---- weight-side precompute (tiny; constant-folds if weights are static) ----
    rows = []
    for k, w in zip(kernel_sizes, conv_weights):
        shift = pad - k // 2
        wt = jnp.transpose(w[0].astype(f32))                    # (k, C)
        wt = jnp.pad(wt, ((shift, k_max - shift - k), (0, 0)))  # (K, C), zero taps
        rows.append(wt.reshape(-1))                             # row-major: p*C + c
    w_flat = jnp.stack(rows)                                    # (NB, K*C)

    pool_mat = _adaptive_avg_pool_matrix(l_out, C)              # (L_out, C) constant
    fcw = fc_w.astype(f32).reshape(nb, C)                       # branch-major (cat order)
    g = jnp.dot(fcw, pool_mat.T)                                # (NB, L_out): pool ∘ fc

    cbias = jnp.concatenate([jnp.asarray(b, f32).reshape(-1) for b in conv_biases])
    bias_eff = (fc_b.astype(f32).reshape(()) +
                jnp.sum(cbias * jnp.sum(g, axis=1))).reshape(1, 1)   # conv bias folded

    # Pack both weight operands into one VMEM slab: [taps | pad | gain(@128-aligned)].
    w_cols = k_max * C
    g_off = pl.cdiv(w_cols, 128) * 128
    slab = jnp.concatenate(
        [jnp.pad(w_flat, ((0, 0), (0, g_off - w_cols))), g], axis=1)   # (NB, g_off+L_out)

    kernel = functools.partial(inception_kernel, w_cols=w_cols, g_off=g_off,
                               l_out=l_out, init_sparsity=float(init_sparsity))

    return pl.pallas_call(
        kernel,
        out_shape=jax.ShapeDtypeStruct((1, 1), jnp.float32),
        # Tiny problem: whole arrays resident, single no-grid invocation.
        in_specs=[pl.BlockSpec(memory_space=pltpu.MemorySpace.VMEM),
                  pl.BlockSpec(memory_space=pltpu.MemorySpace.VMEM),
                  pl.BlockSpec(memory_space=pltpu.MemorySpace.SMEM)],
        out_specs=pl.BlockSpec(memory_space=pltpu.MemorySpace.SMEM),
    )(xs, slab, bias_eff)


def market_guide_inception_ref(x, conv_weights, conv_biases, fc_w, fc_b, *,
                               kernel_sizes, init_sparsity=0.2):
    """Pure-JAX reference mirroring the PyTorch forward exactly."""
    L, C = x.shape
    xc = jnp.transpose(x)[None]                    # (1, C, L)
    pooled_all = []
    for k, w, b in zip(kernel_sizes, conv_weights, conv_biases):
        y = jax.lax.conv_general_dilated(
            xc, w, window_strides=(1,), padding=[(k // 2, k // 2)],
            dimension_numbers=("NCH", "OIH", "NCH"))
        y = (y + b[None, :, None])[0, 0]           # (L_out,)
        lin = y.shape[0]
        pooled = []
        for i in range(C):                          # AdaptiveAvgPool1d(C)
            s = (i * lin) // C
            e = -(-((i + 1) * lin) // C)
            pooled.append(jnp.mean(y[s:e]))
        pooled_all.append(jnp.stack(pooled))
    combined = jnp.concatenate(pooled_all)          # (3*C,)
    score = jnp.dot(combined, fc_w[0]) + fc_b[0]
    return init_sparsity / (1.0 + jnp.exp(-score))


if __name__ == "__main__":
    # Small deterministic example: seq_len=32, input_dim=16.
    input_dim, seq_len = 16, 32
    kernel_sizes = [4, 10, 20]
    init_sparsity = 0.2

    key = jax.random.PRNGKey(0)
    keys = jax.random.split(key, 3 + 2 * len(kernel_sizes))
    k_x, k_fw, k_fb = keys[0], keys[1], keys[2]

    x = jax.random.normal(k_x, (seq_len, input_dim), dtype=jnp.float32)
    conv_weights, conv_biases = [], []
    for i, k in enumerate(kernel_sizes):
        kw, kb = keys[3 + 2 * i], keys[4 + 2 * i]
        conv_weights.append(
            0.1 * jax.random.normal(kw, (1, input_dim, k), dtype=jnp.float32))
        conv_biases.append(
            0.1 * jax.random.normal(kb, (1,), dtype=jnp.float32))
    fc_w = 0.1 * jax.random.normal(
        k_fw, (1, len(kernel_sizes) * input_dim), dtype=jnp.float32)
    fc_b = 0.1 * jax.random.normal(k_fb, (1,), dtype=jnp.float32)

    out = market_guide_inception(x, conv_weights, conv_biases, fc_w, fc_b,
                                 kernel_sizes=kernel_sizes,
                                 init_sparsity=init_sparsity)
    out = jax.block_until_ready(out)

    ref = market_guide_inception_ref(x, conv_weights, conv_biases, fc_w, fc_b,
                                     kernel_sizes=kernel_sizes,
                                     init_sparsity=init_sparsity)
    assert out.shape == (1, 1)
    assert jnp.allclose(out[0, 0], ref, rtol=1e-2, atol=1e-3), (out, ref)
    print("KERNEL_OK")
</pallas_src>

<mosaic_0001>
module attributes {stable_mosaic.version = 11 : i64} {
  func.func @inception_kernel(%arg0: memref<320x33xf32, #tpu.memory_space<vmem>>, %arg1: memref<3x417xf32, #tpu.memory_space<vmem>>, %arg2: memref<1x1xf32, #tpu.memory_space<smem>>, %arg3: memref<1x1xf32, #tpu.memory_space<smem>>) attributes {dimension_semantics = [], scalar_prefetch = 0 : i64, scratch_operands = 0 : i64, tpu.core_type = #tpu.core_type<tc>} {
    %c0 = arith.constant 0 : index
    %c0_0 = arith.constant 0 : index
    %0 = vector.load %arg1[%c0, %c0_0] : memref<3x417xf32, #tpu.memory_space<vmem>>, vector<3x320xf32>
    %c0_1 = arith.constant 0 : index
    %c384 = arith.constant 384 : index
    %1 = vector.load %arg1[%c0_1, %c384] : memref<3x417xf32, #tpu.memory_space<vmem>>, vector<3x33xf32>
    %c0_2 = arith.constant 0 : index
    %c0_3 = arith.constant 0 : index
    %2 = vector.load %arg0[%c0_2, %c0_3] : memref<320x33xf32, #tpu.memory_space<vmem>>, vector<320x33xf32>
    %cst = arith.constant dense<0.000000e+00> : vector<3x33xf32>
    %3 = tpu.matmul %0, %2, %cst {dimension_numbers = #tpu.dot_dimension_numbers<[1], [0], [0], [1], [0, 0, 1, 1], [], []>} : vector<3x320xf32>, vector<320x33xf32>, vector<3x33xf32> -> vector<3x33xf32>
    %4 = arith.mulf %3, %1 : vector<3x33xf32>
    %5 = vector.shape_cast %4 : vector<3x33xf32> to vector<1x3x33xf32>
    %cst_4 = arith.constant dense<0.000000e+00> : vector<1xf32>
    %6 = vector.multi_reduction <add>, %5, %cst_4 [1, 2] : vector<1x3x33xf32> to vector<1xf32>
    %7 = vector.shape_cast %6 : vector<1xf32> to vector<1x1x1xf32>
    %8 = vector.extract %7[0, 0, 0] : f32 from vector<1x1x1xf32>
    %9 = vector.broadcast %8 : f32 to vector<1x1xf32>
    %c0_5 = arith.constant 0 : index
    %c0_6 = arith.constant 0 : index
    %10 = memref.load %arg2[%c0_5, %c0_6] : memref<1x1xf32, #tpu.memory_space<smem>>
    %11 = vector.broadcast %10 : f32 to vector<1x1xf32>
    %12 = arith.addf %9, %11 : vector<1x1xf32>
    %cst_7 = arith.constant 0.000000e+00 : f32
    %13 = vector.broadcast %cst_7 : f32 to vector<1x1xf32>
    %14 = arith.subf %13, %12 : vector<1x1xf32>
    %15 = math.exp %14 : vector<1x1xf32>
    %cst_8 = arith.constant 1.000000e+00 : f32
    %16 = vector.broadcast %cst_8 : f32 to vector<1x1xf32>
    %17 = arith.addf %16, %15 : vector<1x1xf32>
    %cst_9 = arith.constant 2.000000e-01 : f32
    %18 = vector.broadcast %cst_9 : f32 to vector<1x1xf32>
    %19 = arith.divf %18, %17 : vector<1x1xf32>
    %20 = vector.shape_cast %19 : vector<1x1xf32> to vector<1x1x1xf32>
    %cst_10 = arith.constant dense<0.000000e+00> : vector<1xf32>
    %21 = vector.multi_reduction <add>, %20, %cst_10 [1, 2] : vector<1x1x1xf32> to vector<1xf32>
    %22 = vector.shape_cast %21 : vector<1xf32> to vector<1x1x1xf32>
    %23 = vector.extract %22[0, 0, 0] : f32 from vector<1x1x1xf32>
    %c0_11 = arith.constant 0 : index
    %c0_12 = arith.constant 0 : index
    %24 = memref.load %arg3[%c0_11, %c0_12] : memref<1x1xf32, #tpu.memory_space<smem>>
    memref.store %23, %arg3[%c0_11, %c0_12] : memref<1x1xf32, #tpu.memory_space<smem>>
    return
  }
}

</mosaic_0001>

<llo_original>
// kernel: tpu_custom_call.1
$region0: #{tpu_custom_call.1}
  #allocation0 [shape = 'u32[]', space=smem, size = 0x4, offset = 0x4, fixed_abs, tag = 'smem constant byte address 0x4 - core index']
  #allocation1 [shape = 'u32[144,128]{1,0:T(1,128)}', space=vmem, size = 0x12000, scoped, tag = 'internal scratch']
  #allocation2 [shape = 'f32[1,1]{1,0:T(1,128)S(6)}', space=smem, size = 0x200, scoped, tag = 'scoped memory for tpu_custom_call.1']
  %s0 = inlined_call_operand.vmem [shape: f32[320,33], index: 0, kind: input, shape index: {}]
  %s1 = inlined_call_operand.vmem [shape: f32[3,417], index: 1, kind: input, shape index: {}]
  %s2 = inlined_call_operand.<no memory space> [shape: f32[1,1], index: 2, kind: input, shape index: {}]
  %s3 = inlined_call_operand.hbm [shape: f32[1,1], index: 3, kind: output, shape index: {}]
  %s4 = sld [smem:[#allocation0]]
  $region22: #{tpu_custom_call.1} parent=0
    _
  %s6 = ssub.s32 1, %s4
  %s7 = scalar_select 0, %s6, %s4
  %8 = sst [smem:[#allocation2]] %s2
  $region1: #{tpu_custom_call.1} parent=0
    #allocation3 [shape = 'u8[512]{0}', space=smem, size = 0x200, scoped, tag = 'output window, operand 0, single buffered']
    #allocation4 [shape = 's32[1]{0}', space=sflag, size = 0x4, scoped, tag = 'scoped memory for tpu_custom_call.1']
    %9 = vsyncpa [#allocation4], 0
    // Predicated region
    $region2: #{tpu_custom_call.1} parent=1 // pred_check
      _
    $region3: #{tpu_custom_call.1} parent=1 // pred_check_branch
      %11 = sbr.rel (0) target = $region5
    $region4: #{tpu_custom_call.1} parent=1 // pred_region
      _
    $region5: #{tpu_custom_call.1} parent=1 // pred_fallthru
      _
    // Predicated region
    $region6: #{tpu_custom_call.1} parent=1 // pred_check
      _
    $region7: #{tpu_custom_call.1} parent=1 // pred_check_branch
      %13 = sbr.rel (0) target = $region9
    $region8: #{tpu_custom_call.1} parent=1 // pred_region
      _
    $region9: #{tpu_custom_call.1} parent=1 // pred_fallthru
      _
    // Predicated region
    $region10: #{tpu_custom_call.1} parent=1 // pred_check
      _
    $region11: #{tpu_custom_call.1} parent=1 // pred_check_branch
      %15 = sbr.rel (0) target = $region13
    $region12: #{tpu_custom_call.1} parent=1 // pred_region
      _
    $region13: #{tpu_custom_call.1} parent=1 // pred_fallthru
      _
    %v16 = vld [vmem:[%s1] sm:$0x77]
    %v17 = vld [vmem:[%s1 + $0x8] sm:$0x7]
    %v18 = vld [vmem:[%s1 + $0xc] sm:$0x7]
    %v19 = vld [vmem:[%s0] sm:$0xff]
    %v20 = vld [vmem:[%s0 + $0x8] sm:$0xff]
    %v21 = vld [vmem:[%s0 + $0x10] sm:$0xff]
    %v22 = vld [vmem:[%s0 + $0x18] sm:$0xff]
    %v23 = vld [vmem:[%s0 + $0x20] sm:$0xff]
    %v24 = vld [vmem:[%s0 + $0x28] sm:$0xff]
    %v25 = vld [vmem:[%s0 + $0x30] sm:$0xff]
    %v26 = vld [vmem:[%s0 + $0x38] sm:$0xff]
    %v27 = vld [vmem:[%s0 + $0x40] sm:$0xff]
    %v28 = vld [vmem:[%s0 + $0x48] sm:$0xff]
    %v29 = vld [vmem:[%s0 + $0x50] sm:$0xff]
    %v30 = vld [vmem:[%s0 + $0x58] sm:$0xff]
    %v31 = vld [vmem:[%s0 + $0x60] sm:$0xff]
    %v32 = vld [vmem:[%s0 + $0x68] sm:$0xff]
    %v33 = vld [vmem:[%s0 + $0x70] sm:$0xff]
    %v34 = vld [vmem:[%s0 + $0x78] sm:$0xff]
    %v35 = vld [vmem:[%s0 + $0x80] sm:$0xff]
    %v36 = vld [vmem:[%s0 + $0x88] sm:$0xff]
    %v37 = vld [vmem:[%s0 + $0x90] sm:$0xff]
    %v38 = vld [vmem:[%s0 + $0x98] sm:$0xff]
    %v39 = vld [vmem:[%s0 + $0xa0] sm:$0xff]
    %v40 = vld [vmem:[%s0 + $0xa8] sm:$0xff]
    %v41 = vld [vmem:[%s0 + $0xb0] sm:$0xff]
    %v42 = vld [vmem:[%s0 + $0xb8] sm:$0xff]
    %v43 = vld [vmem:[%s0 + $0xc0] sm:$0xff]
    %v44 = vld [vmem:[%s0 + $0xc8] sm:$0xff]
    %v45 = vld [vmem:[%s0 + $0xd0] sm:$0xff]
    %v46 = vld [vmem:[%s0 + $0xd8] sm:$0xff]
    %v47 = vld [vmem:[%s0 + $0xe0] sm:$0xff]
    %v48 = vld [vmem:[%s0 + $0xe8] sm:$0xff]
    %v49 = vld [vmem:[%s0 + $0xf0] sm:$0xff]
    %v50 = vld [vmem:[%s0 + $0xf8] sm:$0xff]
    %v51 = vld [vmem:[%s0 + $0x100] sm:$0xff]
    %v52 = vld [vmem:[%s0 + $0x108] sm:$0xff]
    %v53 = vld [vmem:[%s0 + $0x110] sm:$0xff]
    %v54 = vld [vmem:[%s0 + $0x118] sm:$0xff]
    %v55 = vld [vmem:[%s0 + $0x120] sm:$0xff]
    %v56 = vld [vmem:[%s0 + $0x128] sm:$0xff]
    %v57 = vld [vmem:[%s0 + $0x130] sm:$0xff]
    %v58 = vld [vmem:[%s0 + $0x138] sm:$0xff]
    %v61 = vcombine.high %v16, %v16
    %vm63 = vcmask 523264
    %v64 = vsel %vm63, %v17, 0
    %66 = vmatprep.subr.mxu0 0.0
    %67 = vmatpush1.msra.mxu0 %v19
    %68 = vmatprep.subr.mxu0 0.0
    %69 = vmatpush1.msra.mxu0 %v20
    %70 = vmatprep.subr.mxu0 0.0
    %71 = vmatpush1.msra.mxu0 %v21
    %72 = vmatprep.subr.mxu0 0.0
    %73 = vmatpush1.msra.mxu0 %v22
    %74 = vmatprep.subr.mxu0 0.0
    %75 = vmatpush1.msra.mxu0 %v23
    %76 = vmatprep.subr.mxu0 0.0
    %77 = vmatpush1.msra.mxu0 %v24
    %78 = vmatprep.subr.mxu0 0.0
    %79 = vmatpush1.msra.mxu0 %v25
    %80 = vmatprep.subr.mxu0 0.0
    %81 = vmatpush1.msra.mxu0 %v26
    %82 = vmatprep.subr.mxu0 0.0
    %83 = vmatpush1.msra.mxu0 %v27
    %84 = vmatprep.subr.mxu0 0.0
    %85 = vmatpush1.msra.mxu0 %v28
    %86 = vmatprep.subr.mxu0 0.0
    %87 = vmatpush1.msra.mxu0 %v29
    %88 = vmatprep.subr.mxu0 0.0
    %89 = vmatpush1.msra.mxu0 %v30
    %90 = vmatprep.subr.mxu0 0.0
    %91 = vmatpush1.msra.mxu0 %v31
    %92 = vmatprep.subr.mxu0 0.0
    %93 = vmatpush1.msra.mxu0 %v32
    %94 = vmatprep.subr.mxu0 0.0
    %95 = vmatpush1.msra.mxu0 %v33
    %96 = vmatprep.subr.mxu0 0.0
    %97 = vmatpush1.msra.mxu0 %v34
    %98 = vmatprep.subr.mxu0 0.0
    %99 = vmatpush1.msra.mxu0 %v35
    %100 = vmatprep.subr.mxu0 0.0
    %101 = vmatpush1.msra.mxu0 %v36
    %102 = vmatprep.subr.mxu0 0.0
    %103 = vmatpush1.msra.mxu0 %v37
    %104 = vmatprep.subr.mxu0 0.0
    %105 = vmatpush1.msra.mxu0 %v38
    %106 = vmatprep.subr.mxu0 0.0
    %107 = vmatpush1.msra.mxu0 %v39
    %108 = vmatprep.subr.mxu0 0.0
    %109 = vmatpush1.msra.mxu0 %v40
    %110 = vmatprep.subr.mxu0 0.0
    %111 = vmatpush1.msra.mxu0 %v41
    %112 = vmatprep.subr.mxu0 0.0
    %113 = vmatpush1.msra.mxu0 %v42
    %114 = vmatprep.subr.mxu0 0.0
    %115 = vmatpush1.msra.mxu0 %v43
    %116 = vmatprep.subr.mxu0 0.0
    %117 = vmatpush1.msra.mxu0 %v44
    %118 = vmatprep.subr.mxu0 0.0
    %119 = vmatpush1.msra.mxu0 %v45
    %120 = vmatprep.subr.mxu0 0.0
    %121 = vmatpush1.msra.mxu0 %v46
    %122 = vmatprep.subr.mxu0 0.0
    %123 = vmatpush1.msra.mxu0 %v47
    %124 = vmatprep.subr.mxu0 0.0
    %125 = vmatpush1.msra.mxu0 %v48
    %126 = vmatprep.subr.mxu0 0.0
    %127 = vmatpush1.msra.mxu0 %v49
    %128 = vmatprep.subr.mxu0 0.0
    %129 = vmatpush1.msra.mxu0 %v50
    %130 = vmatprep.mubr.f32.mxu0 %v61
    %131 = vmatmul.mubr.f32.gmra.mrb[0].mxu0 %v16
    %v132 = vpop.f32.mrb[0].mxu0
    %v133 = vadd.f32 0.0, %v132
    %v134 = vpop.f32.mrb[0].mxu0
    %135 = vdwg.mxu0
    %136 = vmatprep.subr.mxu0 0.0
    %137 = vmatpush1.msra.mxu0 %v51
    %138 = vmatprep.subr.mxu0 0.0
    %139 = vmatpush1.msra.mxu0 %v52
    %140 = vmatprep.subr.mxu0 0.0
    %141 = vmatpush1.msra.mxu0 %v53
    %142 = vmatprep.subr.mxu0 0.0
    %143 = vmatpush1.msra.mxu0 %v54
    %144 = vmatprep.subr.mxu0 0.0
    %145 = vmatpush1.msra.mxu0 %v55
    %146 = vmatprep.subr.mxu0 0.0
    %147 = vmatpush1.msra.mxu0 %v56
    %148 = vmatprep.subr.mxu0 0.0
    %149 = vmatpush1.msra.mxu0 %v57
    %150 = vmatprep.subr.mxu0 0.0
    %151 = vmatpush1.msra.mxu0 %v58
    %152 = vmatprep.subr.mxu0 0.0
    %153 = vmatpush1.msra.mxu0 0.0
    %154 = vmatprep.subr.mxu0 0.0
    %155 = vmatpush1.msra.mxu0 0.0
    %156 = vmatprep.subr.mxu0 0.0
    %157 = vmatpush1.msra.mxu0 0.0
    %158 = vmatprep.subr.mxu0 0.0
    %159 = vmatpush1.msra.mxu0 0.0
    %160 = vmatprep.subr.mxu0 0.0
    %161 = vmatpush1.msra.mxu0 0.0
    %162 = vmatprep.subr.mxu0 0.0
    %163 = vmatpush1.msra.mxu0 0.0
    %164 = vmatprep.subr.mxu0 0.0
    %165 = vmatpush1.msra.mxu0 0.0
    %166 = vmatprep.subr.mxu0 0.0
    %167 = vmatpush1.msra.mxu0 0.0
    %168 = vmatprep.subr.mxu0 0.0
    %169 = vmatpush1.msra.mxu0 0.0
    %170 = vmatprep.subr.mxu0 0.0
    %171 = vmatpush1.msra.mxu0 0.0
    %172 = vmatprep.subr.mxu0 0.0
    %173 = vmatpush1.msra.mxu0 0.0
    %174 = vmatprep.subr.mxu0 0.0
    %175 = vmatpush1.msra.mxu0 0.0
    %176 = vmatprep.subr.mxu0 0.0
    %177 = vmatpush1.msra.mxu0 0.0
    %178 = vmatprep.subr.mxu0 0.0
    %179 = vmatpush1.msra.mxu0 0.0
    %180 = vmatprep.subr.mxu0 0.0
    %181 = vmatpush1.msra.mxu0 0.0
    %182 = vmatprep.subr.mxu0 0.0
    %183 = vmatpush1.msra.mxu0 0.0
    %184 = vmatprep.subr.mxu0 0.0
    %185 = vmatpush1.msra.mxu0 0.0
    %186 = vmatprep.subr.mxu0 0.0
    %187 = vmatpush1.msra.mxu0 0.0
    %188 = vmatprep.subr.mxu0 0.0
    %189 = vmatpush1.msra.mxu0 0.0
    %190 = vmatprep.subr.mxu0 0.0
    %191 = vmatpush1.msra.mxu0 0.0
    %192 = vmatprep.subr.mxu0 0.0
    %193 = vmatpush1.msra.mxu0 0.0
    %194 = vmatprep.subr.mxu0 0.0
    %195 = vmatpush1.msra.mxu0 0.0
    %196 = vmatprep.subr.mxu0 0.0
    %197 = vmatpush1.msra.mxu0 0.0
    %198 = vmatprep.subr.mxu0 0.0
    %199 = vmatpush1.msra.mxu0 0.0
    %200 = vmatprep.mubr.f32.mxu0 0.0
    %201 = vmatmul.mubr.f32.gmra.mrb[0].mxu0 %v64
    %v202 = vpop.f32.mrb[0].mxu0
    %v203 = vadd.f32 %v133, %v202
    %v204 = vpop.f32.mrb[0].mxu0
    %205 = vdwg.mxu0
    %v206 = vmul.f32 %v203, %v18
    %vm207 = vcmask 264192
    %v208 = vsel %vm207, %v206, 0.0
    %209 = vadd.xlane.f32.xlu0 %v208
    %v210 = vpop.xlane.xlu0 %209
    %v211 = vrot.slane %v210, 4
    %v212 = vadd.f32 %v210, %v211
    %v213 = vrot.slane %v212, 2
    %v214 = vadd.f32 %v212, %v213
    %v215 = vrot.slane %v214, 1
    %v216 = vadd.f32 %v214, %v215
    %s217 = vtos %v216
    %v218 = vstv %s217
    %s219 = sld [smem:[#allocation2]]
    %v220 = vstv %s219
    %v221 = vadd.f32 %v218, %v220
    %v222 = vsub.f32 0.0, %v221
    %v223 = vmul.f32 %v222, 1.442695
    %v224 = vpow.pop %v223
    %v225 = vadd.f32 %v224, 1.0
    %v226 = vrcp.pop %v225
    %v227 = vmul.f32 0.2, %v226
    %v228 = vadd.f32 %v227, 0.0
    %s229 = vtos %v228
    %s230 = scalar_lea.smem [#allocation3], 0
    %231 = sst [smem:[%s230]] %s229
    // Predicated region
    $region14: #{tpu_custom_call.1} parent=1 // pred_check
      _
    $region15: #{tpu_custom_call.1} parent=1 // pred_check_branch
      %233 = sbr.rel (0) target = $region17
    $region16: #{tpu_custom_call.1} parent=1 // pred_region
      %s235 = ssub.s32 16, 16
      %236 = vsyncadd [#allocation4], %s235
      %239 = dma.smem_to_hbm [#allocation3], 16, %s3, [#allocation4]
    $region17: #{tpu_custom_call.1} parent=1 // pred_fallthru
      _
    // Predicated region
    $region18: #{tpu_custom_call.1} parent=1 // pred_check
      _
    $region19: #{tpu_custom_call.1} parent=1 // pred_check_branch
      %241 = sbr.rel (0) target = $region21
    $region20: #{tpu_custom_call.1} parent=1 // pred_region
      %242 = dma.done [#allocation4], 16
    $region21: #{tpu_custom_call.1} parent=1 // pred_fallthru
      _
    %243 = sfence
    %244 = vsyncpa [#allocation4], 1

</llo_original>
